<compile_context>
chip_gen: v5e
topology: v5e:2x2
jax: 0.10.0
libtpu: 0.0.40
codegen_flags: <defaults>
</compile_context>

<pallas_src>
import math
import functools

import jax
import jax.numpy as jnp
from jax.experimental import pallas as pl
from jax.experimental.pallas import tpu as pltpu


def _classifier_kernel(x_ref, w_ref, b_ref, o_ref, *, logsoftmax, use_mxu):
    # x_ref: (1, Cin, thw)   w_ref: (K, Cin)   b_ref: (K, 1)   o_ref: (1, K, thw)
    x = x_ref[0]                      # (Cin, thw)  -- spatial on lanes
    w = w_ref[...]                    # (K, Cin)

    if use_mxu:
        # (K, Cin) @ (Cin, thw) -> (K, thw)
        logits = jnp.dot(w, x, preferred_element_type=jnp.float32)
    else:
        # Tiny contraction: unrolled VPU broadcast-FMA keeps the MXU (and its
        # padding to 128/256) out of the path entirely.
        cin = x_ref.shape[1]
        acc = w[:, 0:1].astype(jnp.float32) * x[0:1, :].astype(jnp.float32)
        for c in range(1, cin):
            acc = acc + w[:, c:c + 1].astype(jnp.float32) * x[c:c + 1, :].astype(jnp.float32)
        logits = acc

    logits = logits + b_ref[...].astype(jnp.float32)   # (K,1) broadcasts over lanes

    # Numerically stable log-softmax over the class (sublane) axis.
    m = jnp.max(logits, axis=0, keepdims=True)          # (1, thw)
    shifted = logits - m
    lse = jnp.log(jnp.sum(jnp.exp(shifted), axis=0, keepdims=True))
    log_probs = shifted - lse

    if logsoftmax:
        out = log_probs
    else:
        # PyTorch branch: Softmax -> clamp(min=1e-7) -> log  ==  max(log_probs, log(1e-7))
        out = jnp.maximum(log_probs, math.log(1e-7))

    o_ref[0] = out.astype(o_ref.dtype)


def classifier_forward(x, weight, bias, *, logsoftmax=True, max_hw_tile=8192,
                       out_dtype=None):
    """x: (N, Cin, H, W); weight: (K, Cin, 1, 1); bias: (K,).  Returns (N, K, H, W)."""
    N, Cin, H, W = x.shape
    K = weight.shape[0]
    HW = H * W
    out_dtype = x.dtype if out_dtype is None else out_dtype

    # Free views -- no data movement.
    x3 = x.reshape(N, Cin, HW)
    w_mat = weight.reshape(K, Cin)          # (K, Cin)
    b_col = bias.reshape(K, 1)              # (K, 1): lane-broadcast bias

    # Spatial (lane) tile.  If the whole spatial extent fits in one tile we use
    # it directly (a full-extent block has no 128-divisibility requirement);
    # otherwise use a large lane-aligned tile and zero-pad the spatial axis.
    if HW <= max_hw_tile:
        thw, HW_pad = HW, HW
    else:
        thw = (max_hw_tile // 128) * 128
        HW_pad = ((HW + thw - 1) // thw) * thw
    if HW_pad != HW:
        x3 = jnp.pad(x3, ((0, 0), (0, 0), (0, HW_pad - HW)))

    grid = (N, HW_pad // thw)
    use_mxu = Cin > 8

    cost = pl.CostEstimate(
        flops=2 * N * HW_pad * Cin * K,
        transcendentals=N * HW_pad * K,
        bytes_accessed=4 * (N * HW_pad * Cin + Cin * K + K + N * HW_pad * K),
    )

    out3 = pl.pallas_call(
        functools.partial(_classifier_kernel, logsoftmax=logsoftmax, use_mxu=use_mxu),
        out_shape=jax.ShapeDtypeStruct((N, K, HW_pad), out_dtype),
        grid_spec=pltpu.PrefetchScalarGridSpec(
            num_scalar_prefetch=0,
            grid=grid,
            in_specs=[
                pl.BlockSpec((1, Cin, thw), lambda n, j: (n, 0, j)),
                pl.BlockSpec((K, Cin), lambda n, j: (0, 0)),   # weight stays resident
                pl.BlockSpec((K, 1), lambda n, j: (0, 0)),     # bias stays resident
            ],
            out_specs=pl.BlockSpec((1, K, thw), lambda n, j: (n, 0, j)),
        ),
        compiler_params=pltpu.CompilerParams(
            dimension_semantics=("parallel", "parallel"),
        ),
        cost_estimate=cost,
    )(x3, w_mat, b_col)

    if HW_pad != HW:
        out3 = out3[:, :, :HW]
    return out3.reshape(N, K, H, W)        # free view back to NCHW


def init_classifier_params(key, input_channels, n_classes):
    """xavier_uniform for the (K, Cin, 1, 1) conv weight, zero bias."""
    fan_in = input_channels * 1 * 1
    fan_out = n_classes * 1 * 1
    bound = math.sqrt(6.0 / (fan_in + fan_out))
    weight = jax.random.uniform(
        key, (n_classes, input_channels, 1, 1),
        minval=-bound, maxval=bound, dtype=jnp.float32)
    bias = jnp.zeros((n_classes,), dtype=jnp.float32)
    return weight, bias


if __name__ == "__main__":
    key = jax.random.PRNGKey(0)
    k_x, k_w = jax.random.split(key)

    N, Cin, H, W = 2, 4, 16, 16
    n_classes = 4

    x = jax.random.normal(k_x, (N, Cin, H, W), dtype=jnp.float32)
    weight, bias = init_classifier_params(k_w, Cin, n_classes)

    out = classifier_forward(x, weight, bias, logsoftmax=True)
    out = jax.block_until_ready(out)

    assert out.shape == (N, n_classes, H, W)

    # sanity: log-probs exponentiate-sum to ~1 over the channel dim
    probs_sum = jnp.sum(jnp.exp(out), axis=1)
    assert bool(jnp.allclose(probs_sum, 1.0, atol=1e-5))

    # cross-check against a plain-JAX reference
    w_mat = weight.reshape(n_classes, Cin)
    logits_ref = jnp.einsum("kc,nchw->nkhw", w_mat, x) + bias.reshape(1, n_classes, 1, 1)
    ref = jax.nn.log_softmax(logits_ref, axis=1)
    assert bool(jnp.allclose(out, ref, atol=1e-5))

    print("KERNEL_OK")
</pallas_src>

<mosaic_0001>
module attributes {stable_mosaic.version = 11 : i64} {
  func.func @_classifier_kernel(%arg0: i32, %arg1: i32, %arg2: memref<1x4x256xf32, #tpu.memory_space<vmem>>, %arg3: memref<4x4xf32, #tpu.memory_space<vmem>>, %arg4: memref<4x1xf32, #tpu.memory_space<vmem>>, %arg5: memref<1x4x256xf32, #tpu.memory_space<vmem>>) attributes {dimension_semantics = [#tpu.dimension_semantics<parallel>, #tpu.dimension_semantics<parallel>], iteration_bounds = array<i64: 2, 1>, scalar_prefetch = 0 : i64, scratch_operands = 0 : i64, tpu.core_type = #tpu.core_type<tc>, window_params = [{transform_indices = @transform_0, window_bounds = array<i64: 1, 4, 256>}, {pipeline_mode = #tpu.pipeline_mode<synchronous>, transform_indices = @transform_1, window_bounds = array<i64: 4, 4>}, {pipeline_mode = #tpu.pipeline_mode<synchronous>, transform_indices = @transform_2, window_bounds = array<i64: 4, 1>}, {transform_indices = @transform_3, window_bounds = array<i64: 1, 4, 256>}]} {
    %c0 = arith.constant 0 : index
    %c0_0 = arith.constant 0 : index
    %c0_1 = arith.constant 0 : index
    %0 = vector.load %arg2[%c0, %c0_0, %c0_1] : memref<1x4x256xf32, #tpu.memory_space<vmem>>, vector<1x4x256xf32>
    %1 = vector.shape_cast %0 : vector<1x4x256xf32> to vector<4x256xf32>
    %c0_2 = arith.constant 0 : index
    %c0_3 = arith.constant 0 : index
    %2 = vector.load %arg3[%c0_2, %c0_3] : memref<4x4xf32, #tpu.memory_space<vmem>>, vector<4x4xf32>
    %3 = vector.extract_strided_slice %2 {offsets = [0, 0], sizes = [4, 1], strides = [1, 1]} : vector<4x4xf32> to vector<4x1xf32>
    %4 = vector.extract_strided_slice %1 {offsets = [0, 0], sizes = [1, 256], strides = [1, 1]} : vector<4x256xf32> to vector<1x256xf32>
    %5 = vector.broadcast %3 : vector<4x1xf32> to vector<4x256xf32>
    %6 = vector.broadcast %4 : vector<1x256xf32> to vector<4x256xf32>
    %7 = arith.mulf %5, %6 : vector<4x256xf32>
    %8 = vector.extract_strided_slice %2 {offsets = [0, 1], sizes = [4, 1], strides = [1, 1]} : vector<4x4xf32> to vector<4x1xf32>
    %9 = vector.extract_strided_slice %1 {offsets = [1, 0], sizes = [1, 256], strides = [1, 1]} : vector<4x256xf32> to vector<1x256xf32>
    %10 = vector.broadcast %8 : vector<4x1xf32> to vector<4x256xf32>
    %11 = vector.broadcast %9 : vector<1x256xf32> to vector<4x256xf32>
    %12 = arith.mulf %10, %11 : vector<4x256xf32>
    %13 = arith.addf %7, %12 : vector<4x256xf32>
    %14 = vector.extract_strided_slice %2 {offsets = [0, 2], sizes = [4, 1], strides = [1, 1]} : vector<4x4xf32> to vector<4x1xf32>
    %15 = vector.extract_strided_slice %1 {offsets = [2, 0], sizes = [1, 256], strides = [1, 1]} : vector<4x256xf32> to vector<1x256xf32>
    %16 = vector.broadcast %14 : vector<4x1xf32> to vector<4x256xf32>
    %17 = vector.broadcast %15 : vector<1x256xf32> to vector<4x256xf32>
    %18 = arith.mulf %16, %17 : vector<4x256xf32>
    %19 = arith.addf %13, %18 : vector<4x256xf32>
    %20 = vector.extract_strided_slice %2 {offsets = [0, 3], sizes = [4, 1], strides = [1, 1]} : vector<4x4xf32> to vector<4x1xf32>
    %21 = vector.extract_strided_slice %1 {offsets = [3, 0], sizes = [1, 256], strides = [1, 1]} : vector<4x256xf32> to vector<1x256xf32>
    %22 = vector.broadcast %20 : vector<4x1xf32> to vector<4x256xf32>
    %23 = vector.broadcast %21 : vector<1x256xf32> to vector<4x256xf32>
    %24 = arith.mulf %22, %23 : vector<4x256xf32>
    %25 = arith.addf %19, %24 : vector<4x256xf32>
    %c0_4 = arith.constant 0 : index
    %c0_5 = arith.constant 0 : index
    %26 = vector.load %arg4[%c0_4, %c0_5] : memref<4x1xf32, #tpu.memory_space<vmem>>, vector<4x1xf32>
    %27 = vector.broadcast %26 : vector<4x1xf32> to vector<4x256xf32>
    %28 = arith.addf %25, %27 : vector<4x256xf32>
    %cst = arith.constant dense<0xFF800000> : vector<256xf32>
    %29 = vector.multi_reduction <maximumf>, %28, %cst [0] : vector<4x256xf32> to vector<256xf32>
    %30 = vector.shape_cast %29 : vector<256xf32> to vector<1x256xf32>
    %31 = vector.broadcast %30 : vector<1x256xf32> to vector<4x256xf32>
    %32 = arith.subf %28, %31 : vector<4x256xf32>
    %33 = math.exp %32 : vector<4x256xf32>
    %cst_6 = arith.constant dense<0.000000e+00> : vector<256xf32>
    %34 = vector.multi_reduction <add>, %33, %cst_6 [0] : vector<4x256xf32> to vector<256xf32>
    %35 = vector.shape_cast %34 : vector<256xf32> to vector<1x256xf32>
    %36 = math.log %35 : vector<1x256xf32>
    %37 = vector.broadcast %36 : vector<1x256xf32> to vector<4x256xf32>
    %38 = arith.subf %32, %37 : vector<4x256xf32>
    %c0_7 = arith.constant 0 : index
    %c0_8 = arith.constant 0 : index
    %c0_9 = arith.constant 0 : index
    %39 = vector.load %arg5[%c0_7, %c0_8, %c0_9] : memref<1x4x256xf32, #tpu.memory_space<vmem>>, vector<1x4x256xf32>
    %40 = vector.shape_cast %39 : vector<1x4x256xf32> to vector<4x256xf32>
    %41 = vector.shape_cast %38 : vector<4x256xf32> to vector<1x4x256xf32>
    tpu.vector_store %arg5[%c0_7, %c0_8, %c0_9], %41 {strides = array<i32>} : memref<1x4x256xf32, #tpu.memory_space<vmem>>, vector<1x4x256xf32>,
    return
  }
  func.func @transform_0(%arg0: i32, %arg1: i32) -> (i32, i32, i32) {
    %c0_i32 = arith.constant 0 : i32
    %c0_i32_0 = arith.constant 0 : i32
    return %arg0, %c0_i32, %arg1 : i32, i32, i32
  }
  func.func @transform_1(%arg0: i32, %arg1: i32) -> (i32, i32) {
    %c0_i32 = arith.constant 0 : i32
    %c0_i32_0 = arith.constant 0 : i32
    %c0_i32_1 = arith.constant 0 : i32
    return %c0_i32, %c0_i32_0 : i32, i32
  }
  func.func @transform_2(%arg0: i32, %arg1: i32) -> (i32, i32) {
    %c0_i32 = arith.constant 0 : i32
    %c0_i32_0 = arith.constant 0 : i32
    %c0_i32_1 = arith.constant 0 : i32
    return %c0_i32, %c0_i32_0 : i32, i32
  }
  func.func @transform_3(%arg0: i32, %arg1: i32) -> (i32, i32, i32) {
    %c0_i32 = arith.constant 0 : i32
    %c0_i32_0 = arith.constant 0 : i32
    return %arg0, %c0_i32, %arg1 : i32, i32, i32
  }
}

</mosaic_0001>

<llo_original>
// kernel: tpu_custom_call.1
$region0: #{tpu_custom_call.1}
  #allocation0 [shape = 'u32[]', space=smem, size = 0x4, offset = 0x4, fixed_abs, tag = 'smem constant byte address 0x4 - core index']
  #allocation1 [shape = 'u32[72,128]{1,0:T(1,128)}', space=vmem, size = 0x9000, scoped, tag = 'internal scratch']
  %s0 = inlined_call_operand.hbm [shape: f32[2,4,256], index: 0, kind: input, shape index: {}]
  %s1 = inlined_call_operand.vmem [shape: f32[4,4], index: 1, kind: input, shape index: {}]
  %s2 = inlined_call_operand.vmem [shape: f32[4,1], index: 2, kind: input, shape index: {}]
  %s3 = inlined_call_operand.hbm [shape: f32[2,4,256], index: 3, kind: output, shape index: {}]
  %s4 = sld [smem:[#allocation0]]
  $region49: #{tpu_custom_call.1} parent=0
    _
  %s6 = ssub.s32 1, %s4
  %s7 = scalar_select 0, %s6, %s4
  $region1: #{tpu_custom_call.1} parent=0
    #allocation2 [shape = 'u8[8192]{0}', space=vmem, size = 0x2000, scoped, tag = 'input window, operand 0']
    #allocation3 [shape = 's32[2]{0}', space=sflag, size = 0x8, scoped, tag = 'scoped memory for tpu_custom_call.1']
    #allocation4 [shape = 's32[2]{0}', space=sflag, size = 0x8, scoped, tag = 'scoped memory for tpu_custom_call.1']
    #allocation5 [shape = 'u8[8192]{0}', space=vmem, size = 0x2000, scoped, tag = 'output window, operand 0']
    %8 = vsyncpa [#allocation3], 0
    %s9 = scalar_lea.sflag [#allocation3], 1
    %10 = vsyncpa %s9, 0
    %11 = vsyncpa [#allocation4], 0
    %s12 = scalar_lea.sflag [#allocation4], 1
    %13 = vsyncpa %s12, 0
    loop: start=0, step=1, limit=4
    $region2: #{tpu_custom_call.1} parent=1 // loop_pre_header
      _
    $region3: #{tpu_custom_call.1} parent=1 // loop_header
      %s15 = sphi 0, %s19
      %p16 = scmp.ge.s32.totalorder %s15, 4
      %s22 = sphi 0, %s34
      %s23 = sphi 0, %s30
      %s24 = sphi 0, %s22
      %s25 = sphi 0, %s23
      %s26 = sphi 0, %s24
      %s27 = sphi 0, %s25
      %s39 = sphi 0, %s41
      %s42 = sphi 0, %s39
      %s43 = sphi 0, %s42
      %s59 = sphi 0, %s43
      %s63 = sphi 0, %s63
      %s65 = sphi 0, %s63
      %s66 = sphi 0, %s65
      %s80 = sphi 0, %s66
      %s84 = sphi 0, %s84
      %s86 = sphi 0, %s84
      %s87 = sphi 0, %s86
      %s101 = sphi 0, %s87
      %s109 = sphi 0, %s111
      %s112 = sphi 0, %s109
      %s113 = sphi 0, %s112
      %s129 = sphi 0, %s113
    $region4: #{tpu_custom_call.1} parent=1 // loop_header_branch
      %18 = sbr.rel (%p16) target = $region8
    $region5: #{tpu_custom_call.1} parent=1 // loop_body
      %s20 = ssub.s32 %s15, 1
      %s21 = ssub.s32 %s15, 2
      %s28 = sadd.s32 1, %s23
      %p29 = scmp.ge.s32.totalorder %s28, 1
      %s30 = scalar_select %p29, 0, %s28
      %s31 = sadd.s32 1, %s22
      %s32 = scalar_select %p29, %s31, %s22
      %p33 = scmp.ge.s32.totalorder %s32, 2
      %s34 = scalar_select %p33, 0, %s32
      %s35 = ssub.s32 %s22, %s34
      %s36 = ssub.s32 %s23, %s30
      %s37 = sor.u32 %s35, %s36
      %p38 = scmp.eq.s32.totalorder %s37, 0
      %s40 = sadd.s32 %s39, 1
      %s41 = scalar_select %p38, %s39, %s40
      %p44 = pneg %p38
      %p45 = scmp.eq.s32.totalorder %s15, 1
      %p46 = por %p44, %p45
      %p47 = scmp.ne.s32.totalorder %s39, %s42
      %p48 = scmp.eq.s32.totalorder %s15, 0
      %p49 = por %p47, %p48
      %p50 = scmp.ne.s32.totalorder %s39, %s42
      %p51 = scmp.eq.s32.totalorder %s20, 1
      %p52 = por %p50, %p51
      %p53 = scmp.ne.s32.totalorder %s42, %s43
      %p54 = scmp.eq.s32.totalorder %s20, 0
      %p55 = por %p53, %p54
      %p56 = scmp.ne.s32.totalorder %s42, %s43
      %p57 = scmp.eq.s32.totalorder %s21, 1
      %p58 = por %p56, %p57
      %p60 = scmp.ne.s32.totalorder %s43, %s59
      %p61 = scmp.eq.s32.totalorder %s21, 0
      %p62 = por %p60, %p61
      %s64 = sadd.s32 %s63, 1
      %p67 = scmp.eq.s32.totalorder %s15, 1
      %p68 = scmp.ne.s32.totalorder %s63, %s65
      %p69 = scmp.eq.s32.totalorder %s15, 0
      %p70 = por %p68, %p69
      %p71 = scmp.ne.s32.totalorder %s63, %s65
      %p72 = scmp.eq.s32.totalorder %s20, 1
      %p73 = por %p71, %p72
      %p74 = scmp.ne.s32.totalorder %s65, %s66
      %p75 = scmp.eq.s32.totalorder %s20, 0
      %p76 = por %p74, %p75
      %p77 = scmp.ne.s32.totalorder %s65, %s66
      %p78 = scmp.eq.s32.totalorder %s21, 1
      %p79 = por %p77, %p78
      %p81 = scmp.ne.s32.totalorder %s66, %s80
      %p82 = scmp.eq.s32.totalorder %s21, 0
      %p83 = por %p81, %p82
      %s85 = sadd.s32 %s84, 1
      %p88 = scmp.eq.s32.totalorder %s15, 1
      %p89 = scmp.ne.s32.totalorder %s84, %s86
      %p90 = scmp.eq.s32.totalorder %s15, 0
      %p91 = por %p89, %p90
      %p92 = scmp.ne.s32.totalorder %s84, %s86
      %p93 = scmp.eq.s32.totalorder %s20, 1
      %p94 = por %p92, %p93
      %p95 = scmp.ne.s32.totalorder %s86, %s87
      %p96 = scmp.eq.s32.totalorder %s20, 0
      %p97 = por %p95, %p96
      %p98 = scmp.ne.s32.totalorder %s86, %s87
      %p99 = scmp.eq.s32.totalorder %s21, 1
      %p100 = por %p98, %p99
      %p102 = scmp.ne.s32.totalorder %s87, %s101
      %p103 = scmp.eq.s32.totalorder %s21, 0
      %p104 = por %p102, %p103
      %s105 = ssub.s32 %s22, %s34
      %s106 = ssub.s32 %s23, %s30
      %s107 = sor.u32 %s105, %s106
      %p108 = scmp.eq.s32.totalorder %s107, 0
      %s110 = sadd.s32 %s109, 1
      %s111 = scalar_select %p108, %s109, %s110
      %p114 = pneg %p108
      %p115 = scmp.eq.s32.totalorder %s15, 1
      %p116 = por %p114, %p115
      %p117 = scmp.ne.s32.totalorder %s109, %s112
      %p118 = scmp.eq.s32.totalorder %s15, 0
      %p119 = por %p117, %p118
      %p120 = scmp.ne.s32.totalorder %s109, %s112
      %p121 = scmp.eq.s32.totalorder %s20, 1
      %p122 = por %p120, %p121
      %p123 = scmp.ne.s32.totalorder %s112, %s113
      %p124 = scmp.eq.s32.totalorder %s20, 0
      %p125 = por %p123, %p124
      %p126 = scmp.ne.s32.totalorder %s112, %s113
      %p127 = scmp.eq.s32.totalorder %s21, 1
      %p128 = por %p126, %p127
      %p130 = scmp.ne.s32.totalorder %s113, %s129
      %p131 = scmp.eq.s32.totalorder %s21, 0
      %p132 = por %p130, %p131
      %p133 = scmp.le.s32.totalorder 1, %s15
      %p134 = scmp.lt.s32.totalorder %s15, 3
      %p135 = pnand %p133, %p134
      %p136 = pneg %p135
      // Predicated region
      $region9: #{tpu_custom_call.1} parent=5 // pred_check
        _
      $region10: #{tpu_custom_call.1} parent=5 // pred_check_branch
        %138 = sbr.rel (%p135) target = $region12
      $region11: #{tpu_custom_call.1} parent=5 // pred_region
        %s139 = ssub.s32 %s15, 1
        // Predicated region
        $region13: #{tpu_custom_call.1} parent=11 // pred_check
          %p140 = pneg %p76
        $region14: #{tpu_custom_call.1} parent=11 // pred_check_branch
          %142 = sbr.rel (%p140) target = $region16
        $region15: #{tpu_custom_call.1} parent=11 // pred_region
          _
        $region16: #{tpu_custom_call.1} parent=11 // pred_fallthru
          _
        // Predicated region
        $region17: #{tpu_custom_call.1} parent=11 // pred_check
          %p143 = pneg %p97
        $region18: #{tpu_custom_call.1} parent=11 // pred_check_branch
          %145 = sbr.rel (%p143) target = $region20
        $region19: #{tpu_custom_call.1} parent=11 // pred_region
          _
        $region20: #{tpu_custom_call.1} parent=11 // pred_fallthru
          _
      $region12: #{tpu_custom_call.1} parent=5 // pred_fallthru
        _
      %p146 = scmp.lt.s32.totalorder %s15, 2
      // Predicated region
      $region21: #{tpu_custom_call.1} parent=5 // pred_check
        %p147 = pneg %p146
      $region22: #{tpu_custom_call.1} parent=5 // pred_check_branch
        %149 = sbr.rel (%p147) target = $region24
      $region23: #{tpu_custom_call.1} parent=5 // pred_region
        // Predicated region
        $region25: #{tpu_custom_call.1} parent=23 // pred_check
          %p150 = pneg %p49
        $region26: #{tpu_custom_call.1} parent=23 // pred_check_branch
          %152 = sbr.rel (%p150) target = $region28
        $region27: #{tpu_custom_call.1} parent=23 // pred_region
          %s153 = sand.u32 %s39, 1
          %s154 = scalar_lea.sflag [#allocation3], %s153
          %s155 = sand.u32 %s39, 1
          %s156 = smul.addr %s155, 8
          %s157 = scalar_lea.vmem [#allocation2], %s156
          %s158 = smul.u32 2, %s23
          %160 = vsyncadd %s154, 0
          %s161 = smul.addr %s22, 2
          %s162 = sadd.s32 %s158, %s161
          %s163 = smul.addr %s162, 4
          %s164 = scalar_lea.hbm %s0, %s163
          %s166 = sshll.u32 %s164, 4
          %s167 = int_to_ptr.hbm [resolvable:$true] %s166
          %s168 = sshll.u32 %s157, 4
          %s169 = int_to_ptr.vmem [resolvable:$true] %s168
          %171 = dma.hbm_to_vmem [thread:$0]  %s167, 128, %s169, %s154
        $region28: #{tpu_custom_call.1} parent=23 // pred_fallthru
          _
      $region24: #{tpu_custom_call.1} parent=5 // pred_fallthru
        _
      %p172 = scmp.le.s32.totalorder 1, %s15
      %p173 = scmp.lt.s32.totalorder %s15, 3
      %p174 = pnand %p172, %p173
      %p175 = pneg %p174
      // Predicated region
      $region29: #{tpu_custom_call.1} parent=5 // pred_check
        _
      $region30: #{tpu_custom_call.1} parent=5 // pred_check_branch
        %177 = sbr.rel (%p174) target = $region32
      $region31: #{tpu_custom_call.1} parent=5 // pred_region
        %s178 = ssub.s32 %s15, 1
        %s179 = sand.u32 %s42, 1
        %s180 = scalar_lea.sflag [#allocation3], %s179
        %s181 = sand.u32 %s42, 1
        %s182 = smul.addr %s181, 8
        %s183 = scalar_lea.vmem [#allocation2], %s182
        // Predicated region
        $region33: #{tpu_custom_call.1} parent=31 // pred_check
          %p184 = pneg %p55
        $region34: #{tpu_custom_call.1} parent=31 // pred_check_branch
          %186 = sbr.rel (%p184) target = $region36
        $region35: #{tpu_custom_call.1} parent=31 // pred_region
          %188 = dma.done %s180, 128
        $region36: #{tpu_custom_call.1} parent=31 // pred_fallthru
          _
        %s189 = sand.u32 %s42, 1
        %s190 = scalar_lea.sflag [#allocation3], %s189
        %s191 = sand.u32 %s42, 1
        %s192 = smul.addr %s191, 8
        %s193 = scalar_lea.vmem [#allocation2], %s192
        %p194 = pneg %p55
        %p195 = pneg %p52
        %p196 = pneg %p76
        %p197 = pneg %p73
        %p198 = pneg %p97
        %p199 = pneg %p94
        %p200 = pneg %p125
        %p201 = pneg %p122
        %s202 = sand.u32 %s112, 1
        %s203 = scalar_lea.sflag [#allocation4], %s202
        %s204 = sand.u32 %s112, 1
        %s205 = smul.addr %s204, 8
        %s206 = scalar_lea.vmem [#allocation5], %s205
        %s207 = smul.u32 2, %s25
        %s208 = smul.u32 2, %s25
        %v209 = vld [vmem:[%s183] sm:$0xff]
        %v210 = vld [vmem:[%s1] sm:$0xf]
        %212 = vset.pattern.permute.xlu0 0
        %213 = vperm.xlu0 %212, %v210
        %v214 = vpop.permute.xlu0 %213
        %v217 = vperm.slane %v209, 0
        %v218 = vperm.slane %v209, 4
        %v221 = vperm.slane %v217, 0
        %v222 = vperm.slane %v218, 0
        %v223 = vmul.f32 %v214, %v221
        %v224 = vmul.f32 %v214, %v222
        %225 = vset.pattern.permute.xlu0 1
        %226 = vperm.xlu0 %225, %v210
        %v227 = vpop.permute.xlu0 %226
        %v229 = vperm.slane %v209, 1
        %v230 = vperm.slane %v209, 5
        %v233 = vperm.slane %v229, 1
        %v234 = vperm.slane %v230, 1
        %v235 = vmul.f32 %v227, %v233
        %v236 = vmul.f32 %v227, %v234
        %v237 = vadd.f32 %v223, %v235
        %v238 = vadd.f32 %v224, %v236
        %239 = vset.pattern.permute.xlu0 2
        %240 = vperm.xlu0 %239, %v210
        %v241 = vpop.permute.xlu0 %240
        %v243 = vperm.slane %v209, 2
        %v244 = vperm.slane %v209, 6
        %v247 = vperm.slane %v243, 2
        %v248 = vperm.slane %v244, 2
        %v249 = vmul.f32 %v241, %v247
        %v250 = vmul.f32 %v241, %v248
        %v251 = vadd.f32 %v237, %v249
        %v252 = vadd.f32 %v238, %v250
        %253 = vset.pattern.permute.xlu0 3
        %254 = vperm.xlu0 %253, %v210
        %v255 = vpop.permute.xlu0 %254
        %v257 = vperm.slane %v209, 3
        %v258 = vperm.slane %v209, 7
        %v261 = vperm.slane %v257, 3
        %v262 = vperm.slane %v258, 3
        %v263 = vmul.f32 %v255, %v261
        %v264 = vmul.f32 %v255, %v262
        %v265 = vadd.f32 %v251, %v263
        %v266 = vadd.f32 %v252, %v264
        %v267 = vld [vmem:[%s2] sm:$0xf]
        %269 = vset.pattern.permute.xlu0 0
        %270 = vperm.xlu0 %269, %v267
        %v271 = vpop.permute.xlu0 %270
        %v273 = vadd.f32 %v265, %v271
        %v274 = vadd.f32 %v266, %v271
        %vm275 = vcmask 1043456
        %v276 = vsel %vm275, %v273, -inf
        %v277 = vrot.slane %v276, 4
        %v278 = vmax.f32 %v276, %v277
        %v279 = vrot.slane %v278, 2
        %v280 = vmax.f32 %v278, %v279
        %v281 = vrot.slane %v280, 1
        %v282 = vmax.f32 %v280, %v281
        %v283 = vsel %vm275, %v274, -inf
        %v284 = vrot.slane %v283, 4
        %v285 = vmax.f32 %v283, %v284
        %v286 = vrot.slane %v285, 2
        %v287 = vmax.f32 %v285, %v286
        %v288 = vrot.slane %v287, 1
        %v289 = vmax.f32 %v287, %v288
        %v290 = vsub.f32 %v273, %v282
        %v291 = vsub.f32 %v274, %v289
        %v292 = vmul.f32 %v290, 1.442695
        %v293 = vpow.pop %v292
        %v294 = vmul.f32 %v291, 1.442695
        %v295 = vpow.pop %v294
        %v296 = vsel %vm275, %v293, 0.0
        %v297 = vrot.slane %v296, 4
        %v298 = vadd.f32 %v296, %v297
        %v299 = vrot.slane %v298, 2
        %v300 = vadd.f32 %v298, %v299
        %v301 = vrot.slane %v300, 1
        %v302 = vadd.f32 %v300, %v301
        %v303 = vsel %vm275, %v295, 0.0
        %v304 = vrot.slane %v303, 4
        %v305 = vadd.f32 %v303, %v304
        %v306 = vrot.slane %v305, 2
        %v307 = vadd.f32 %v305, %v306
        %v308 = vrot.slane %v307, 1
        %v309 = vadd.f32 %v307, %v308
        %v310 = vlog2.pop %v302
        %v311 = vmul.f32 %v310, 0.6931472
        %v312 = vlog2.pop %v309
        %v313 = vmul.f32 %v312, 0.6931472
        %v314 = vsub.f32 %v290, %v311
        %v315 = vsub.f32 %v291, %v313
        %v318 = vrot.slane %v315, 4
        %v319 = vsel %vm275, %v314, %v318
        %321 = vst [vmem:[%s206] sm:$0xff] %v319
        %s322 = sand.u32 %s112, 1
        %s323 = scalar_lea.sflag [#allocation4], %s322
        %s324 = sand.u32 %s112, 1
        %s325 = smul.addr %s324, 8
        %s326 = scalar_lea.vmem [#allocation5], %s325
        // Predicated region
        $region37: #{tpu_custom_call.1} parent=31 // pred_check
          %p327 = pneg %p122
        $region38: #{tpu_custom_call.1} parent=31 // pred_check_branch
          %329 = sbr.rel (%p327) target = $region40
        $region39: #{tpu_custom_call.1} parent=31 // pred_region
          %s330 = smul.u32 2, %s25
          %332 = vsyncadd %s323, 0
          %s333 = smul.addr %s24, 2
          %s334 = sadd.s32 %s330, %s333
          %s335 = smul.addr %s334, 4
          %s336 = scalar_lea.hbm %s3, %s335
          %s338 = sshll.u32 %s326, 4
          %s339 = int_to_ptr.vmem [resolvable:$true] %s338
          %s340 = sshll.u32 %s336, 4
          %s341 = int_to_ptr.hbm [resolvable:$true] %s340
          %343 = dma.vmem_to_hbm [thread:$0]  %s339, 128, %s341, %s323
        $region40: #{tpu_custom_call.1} parent=31 // pred_fallthru
          _
      $region32: #{tpu_custom_call.1} parent=5 // pred_fallthru
        _
      %p344 = scmp.le.s32.totalorder 2, %s15
      // Predicated region
      $region41: #{tpu_custom_call.1} parent=5 // pred_check
        %p345 = pneg %p344
      $region42: #{tpu_custom_call.1} parent=5 // pred_check_branch
        %347 = sbr.rel (%p345) target = $region44
      $region43: #{tpu_custom_call.1} parent=5 // pred_region
        %s348 = ssub.s32 %s15, 2
        // Predicated region
        $region45: #{tpu_custom_call.1} parent=43 // pred_check
          %p349 = pneg %p128
        $region46: #{tpu_custom_call.1} parent=43 // pred_check_branch
          %351 = sbr.rel (%p349) target = $region48
        $region47: #{tpu_custom_call.1} parent=43 // pred_region
          %s352 = sand.u32 %s113, 1
          %s353 = scalar_lea.sflag [#allocation4], %s352
          %s354 = sand.u32 %s113, 1
          %s355 = smul.addr %s354, 8
          %s356 = scalar_lea.vmem [#allocation5], %s355
          %358 = dma.done %s353, 128
        $region48: #{tpu_custom_call.1} parent=43 // pred_fallthru
          _
      $region44: #{tpu_custom_call.1} parent=5 // pred_fallthru
        _
    $region6: #{tpu_custom_call.1} parent=1 // loop_footer
      %s19 = sadd.s32 1, %s15
    $region7: #{tpu_custom_call.1} parent=1 // loop_footer_branch
      %14 = sbr.rel target = $region3
    $region8: #{tpu_custom_call.1} parent=1 // loop_exit
      _
    %359 = vsyncpa [#allocation3], 1
    %s360 = scalar_lea.sflag [#allocation3], 1
    %361 = vsyncpa %s360, 1
    %362 = vsyncpa [#allocation4], 1
    %s363 = scalar_lea.sflag [#allocation4], 1
    %364 = vsyncpa %s363, 1

</llo_original>
